<compile_context>
chip_gen: v7x
topology: tpu7x:2x2x1
jax: 0.10.0
libtpu: 0.0.40
codegen_flags: <defaults>
</compile_context>

<pallas_src>
import functools

import jax
import jax.numpy as jnp
from jax.experimental import pallas as pl
from jax.experimental.pallas import tpu as pltpu


# ------------------------------ VMEM budget --------------------------------- #
def _default_vmem_limit():
  # v5e/v6e: 128 MiB physical -> use ~96 MiB scoped; v7x: 64 MiB -> ~48 MiB.
  try:
    cap = pltpu.get_tpu_info().vmem_capacity_bytes
    return int(min(cap * 3 // 4, 96 * 1024 * 1024))
  except Exception:
    return 48 * 1024 * 1024


_VMEM_LIMIT = _default_vmem_limit()


# ------------------------------ tiling helpers ------------------------------ #
def _seq_tile(dim, cap, aligns=(128, 8)):
  """Largest divisor of dim <= cap that is a multiple of an allowed alignment."""
  if dim <= cap:
    return dim
  for align in aligns:
    best = 0
    t = align
    while t <= cap:
      if dim % t == 0:
        best = t
      t += align
    if best:
      return best
  # TODO(synk): pad ragged sequence lengths instead of a full-dim fallback.
  return dim


def _tile_and_pad(dim, cap, align=128):
  """Return (tile, padded_dim). Prefers MXU-aligned divisors, pads otherwise."""
  if dim <= cap:
    return dim, dim
  best = 0
  t = align
  while t <= cap:
    if dim % t == 0:
      best = t
    t += align
  if best:
    return best, dim
  padded = -(-dim // cap) * cap     # round dim up to a multiple of cap
  return cap, padded


# --------------------------- tiled matmul kernel ---------------------------- #
def _matmul_kernel(x_ref, w_ref, o_ref, acc_ref):
  @pl.when(pl.program_id(2) == 0)
  def _():
    acc_ref[...] = jnp.zeros(acc_ref.shape, jnp.float32)

  acc_ref[...] += jnp.dot(
      x_ref[...], w_ref[...], preferred_element_type=jnp.float32)

  @pl.when(pl.program_id(2) == pl.num_programs(2) - 1)
  def _():
    o_ref[...] = acc_ref[...].astype(o_ref.dtype)


def matmul_pallas(x, w, out_dtype=None, *, tm_cap=512, tn_cap=512, tk_cap=512):
  """x: (M, K) @ w: (K, N) -> (M, N), tiled + pipelined, f32 accumulation."""
  M, K = x.shape
  Kw, N = w.shape
  assert K == Kw
  out_dtype = out_dtype or x.dtype

  tm, Mp = _tile_and_pad(M, tm_cap, 128)
  tn, Np = _tile_and_pad(N, tn_cap, 128)
  tk, Kp = _tile_and_pad(K, tk_cap, 128)
  if Mp != M or Kp != K:
    x = jnp.pad(x, ((0, Mp - M), (0, Kp - K)))
  if Kp != K or Np != N:
    w = jnp.pad(w, ((0, Kp - K), (0, Np - N)))

  grid = (Mp // tm, Np // tn, Kp // tk)
  out = pl.pallas_call(
      _matmul_kernel,
      out_shape=jax.ShapeDtypeStruct((Mp, Np), out_dtype),
      grid=grid,
      in_specs=[
          pl.BlockSpec((tm, tk), lambda i, j, k: (i, k)),
          pl.BlockSpec((tk, tn), lambda i, j, k: (k, j)),
      ],
      out_specs=pl.BlockSpec((tm, tn), lambda i, j, k: (i, j)),
      scratch_shapes=[pltpu.VMEM((tm, tn), jnp.float32)],
      compiler_params=pltpu.CompilerParams(
          dimension_semantics=("parallel", "parallel", "arbitrary"),
          vmem_limit_bytes=_VMEM_LIMIT),
  )(x, w)
  if Mp != M or Np != N:
    out = out[:M, :N]
  return out


# ------------------------------- RoPE kernel -------------------------------- #
def _rope_kernel(q_ref, k_ref, cos_ref, sin_ref, qo_ref, ko_ref, *,
                 head_dim, scaling):
  d = head_dim
  dh = d // 2
  cos = cos_ref[0].astype(jnp.float32)          # (ts, dh)
  sin = sin_ref[0].astype(jnp.float32)
  num_q_heads = q_ref.shape[2] // d
  num_kv_heads = k_ref.shape[2] // d

  def _apply(x_ref, o_ref, n_heads, scale):
    for h in range(n_heads):
      x1 = x_ref[0, :, h * d:h * d + dh].astype(jnp.float32)
      x2 = x_ref[0, :, h * d + dh:(h + 1) * d].astype(jnp.float32)
      # Direct half-writes: no lane-axis concatenate in the kernel.
      o_ref[0, :, h * d:h * d + dh] = (
          (x1 * cos - x2 * sin) * scale).astype(o_ref.dtype)
      o_ref[0, :, h * d + dh:(h + 1) * d] = (
          (x1 * sin + x2 * cos) * scale).astype(o_ref.dtype)

  _apply(q_ref, qo_ref, num_q_heads, scaling)   # fold 1/sqrt(D) into Q
  _apply(k_ref, ko_ref, num_kv_heads, 1.0)


def rope_pallas(xq, xk, cos, sin, *, head_dim, scaling):
  """Apply rotary embedding once to Q (scaled) and K; bf16 outputs."""
  B, S, q_width = xq.shape
  kv_width = xk.shape[2]
  dh = head_dim // 2
  ts = _seq_tile(S, 256, aligns=(128, 8))
  grid = (B, S // ts)

  kernel = functools.partial(_rope_kernel, head_dim=head_dim, scaling=scaling)
  return pl.pallas_call(
      kernel,
      out_shape=(jax.ShapeDtypeStruct((B, S, q_width), xq.dtype),
                 jax.ShapeDtypeStruct((B, S, kv_width), xk.dtype)),
      grid=grid,
      in_specs=[
          pl.BlockSpec((1, ts, q_width), lambda b, si: (b, si, 0)),
          pl.BlockSpec((1, ts, kv_width), lambda b, si: (b, si, 0)),
          pl.BlockSpec((1, ts, dh), lambda b, si: (b, si, 0)),
          pl.BlockSpec((1, ts, dh), lambda b, si: (b, si, 0)),
      ],
      out_specs=(
          pl.BlockSpec((1, ts, q_width), lambda b, si: (b, si, 0)),
          pl.BlockSpec((1, ts, kv_width), lambda b, si: (b, si, 0)),
      ),
      compiler_params=pltpu.CompilerParams(
          dimension_semantics=("parallel", "parallel"),
          vmem_limit_bytes=_VMEM_LIMIT),
  )(xq, xk, cos, sin)


# --------------------------- flash attention kernel ------------------------- #
def _flash_attention_kernel(*args, qpkv, head_dim, causal):
  if causal:
    q_ref, k_ref, v_ref, o_ref, m_s, l_s, acc_s = args
    mask_ref = None
  else:
    q_ref, k_ref, v_ref, mask_ref, o_ref, m_s, l_s, acc_s = args

  qi = pl.program_id(1)
  ki = pl.program_id(2)

  d = head_dim
  tq = q_ref.shape[1]
  tkv = k_ref.shape[1]
  num_q_heads = q_ref.shape[2] // d
  num_kv_heads = k_ref.shape[2] // d

  @pl.when(ki == 0)
  def _init():
    m_s[...] = jnp.full(m_s.shape, -jnp.inf, jnp.float32)
    l_s[...] = jnp.zeros(l_s.shape, jnp.float32)
    acc_s[...] = jnp.zeros(acc_s.shape, jnp.float32)

  def _compute():
    if causal:
      rows = qi * tq + jax.lax.broadcasted_iota(jnp.int32, (tq, tkv), 0)
      cols = ki * tkv + jax.lax.broadcasted_iota(jnp.int32, (tq, tkv), 1)
      mask_add = jnp.where(cols <= rows, 0.0, -1e30).astype(jnp.float32)
    else:
      # TODO(synk): an int8/bool mask (expanded in-kernel) would cut mask HBM
      # traffic 4x; kept f32-additive for exact module semantics.
      mask_add = mask_ref[0, 0].astype(jnp.float32)              # (tq, tkv)

    # kv-head OUTER, grouped query heads INNER: only one K/V tile is live.
    for hk in range(num_kv_heads):
      k_h = k_ref[0, :, hk * d:(hk + 1) * d]                     # (tkv,d) bf16
      v_h = v_ref[0, :, hk * d:(hk + 1) * d]                     # (tkv,d) bf16
      for g in range(qpkv):
        h = hk * qpkv + g
        q_h = q_ref[0, :, h * d:(h + 1) * d]                     # roped*scale
        # QK^T without explicit transpose: contract on the last dims.
        s = jax.lax.dot_general(
            q_h, k_h, (((1,), (1,)), ((), ())),
            preferred_element_type=jnp.float32)                  # (tq, tkv)
        s = s + mask_add
        m_prev = m_s[h]                                          # (tq, 1)
        m_new = jnp.maximum(m_prev, jnp.max(s, axis=-1, keepdims=True))
        alpha = jnp.exp(m_prev - m_new)
        p = jnp.exp(s - m_new)
        l_s[h] = alpha * l_s[h] + jnp.sum(p, axis=-1, keepdims=True)
        acc_s[:, h * d:(h + 1) * d] = (
            alpha * acc_s[:, h * d:(h + 1) * d]
            + jnp.dot(p.astype(v_h.dtype), v_h,
                      preferred_element_type=jnp.float32))
        m_s[h] = m_new

  if causal:
    # Skip compute for kv blocks entirely in the masked future (their DMAs
    # are already elided by the clamped index_map).
    @pl.when(ki * tkv <= qi * tq + (tq - 1))
    def _():
      _compute()
  else:
    _compute()

  @pl.when(ki == pl.num_programs(2) - 1)
  def _finalize():
    for h in range(num_q_heads):
      inv = pl.reciprocal(jnp.maximum(l_s[h], 1e-30), approx=True)  # (tq, 1)
      acc_s[:, h * d:(h + 1) * d] = acc_s[:, h * d:(h + 1) * d] * inv
    # Single lane-dense store of the whole (tq, Hq*D) tile.
    o_ref[0] = acc_s[...].astype(o_ref.dtype)


def flash_attention_pallas(xq, xk, xv, mask, *,
                           num_heads, num_kv_heads, head_dim):
  """xq: (B,S,Hq*D) roped & pre-scaled, xk: (B,S,Hkv*D) roped, xv: (B,S,Hkv*D).
  mask: None (causal, generated in-kernel) or (B,1,S,S) additive."""
  B, S, q_width = xq.shape
  kv_width = xk.shape[2]
  assert q_width == num_heads * head_dim
  assert num_heads % num_kv_heads == 0
  qpkv = num_heads // num_kv_heads
  causal = mask is None

  tq = _seq_tile(S, 128, aligns=(128, 8))
  tkv = _seq_tile(S, 128, aligns=(128, 8) if causal else (128,))
  grid = (B, S // tq, S // tkv)

  if causal:
    # Clamp the KV block index so fully-masked blocks map to the last needed
    # block -> the pipeline never re-fetches them (halves K/V HBM traffic).
    def kv_map(b, qi, ki):
      return (b, jnp.minimum(ki, (qi * tq + tq - 1) // tkv), 0)
  else:
    def kv_map(b, qi, ki):
      return (b, ki, 0)

  in_specs = [
      pl.BlockSpec((1, tq, q_width), lambda b, qi, ki: (b, qi, 0)),
      pl.BlockSpec((1, tkv, kv_width), kv_map),
      pl.BlockSpec((1, tkv, kv_width), kv_map),
  ]
  inputs = [xq, xk, xv]
  if not causal:
    in_specs.append(
        pl.BlockSpec((1, 1, tq, tkv), lambda b, qi, ki: (b, 0, qi, ki)))
    inputs.append(mask)

  kernel = functools.partial(
      _flash_attention_kernel, qpkv=qpkv, head_dim=head_dim, causal=causal)

  return pl.pallas_call(
      kernel,
      out_shape=jax.ShapeDtypeStruct((B, S, q_width), xq.dtype),
      grid=grid,
      in_specs=in_specs,
      out_specs=pl.BlockSpec((1, tq, q_width), lambda b, qi, ki: (b, qi, 0)),
      scratch_shapes=[
          pltpu.VMEM((num_heads, tq, 1), jnp.float32),   # running max
          pltpu.VMEM((num_heads, tq, 1), jnp.float32),   # running sum
          pltpu.VMEM((tq, q_width), jnp.float32),        # lane-dense accumulator
      ],
      compiler_params=pltpu.CompilerParams(
          dimension_semantics=("parallel", "parallel", "arbitrary"),
          vmem_limit_bytes=_VMEM_LIMIT),
  )(*inputs)


# ------------------------------ module glue -------------------------------- #
def gemma_attention_forward(hidden_states, cos, sin, params, *,
                            num_heads, num_kv_heads, head_dim, mask=None):
  B, S, E = hidden_states.shape
  q_size = num_heads * head_dim
  kv_size = num_kv_heads * head_dim
  compute_dtype = jnp.bfloat16       # MXU-native inputs; f32 accumulation.

  x2d = hidden_states.reshape(B * S, E).astype(compute_dtype)

  # Fused QKV projection: one wide matmul instead of three skinny ones.
  wqkv = params.get("wqkv")
  if wqkv is None:
    wqkv = jnp.concatenate([params["wq"], params["wk"], params["wv"]], axis=1)
  qkv = matmul_pallas(x2d, wqkv.astype(compute_dtype),
                      out_dtype=compute_dtype)                 # (B*S, q+2*kv)

  xq = qkv[:, :q_size].reshape(B, S, q_size)
  xk = qkv[:, q_size:q_size + kv_size].reshape(B, S, kv_size)
  xv = qkv[:, q_size + kv_size:].reshape(B, S, kv_size)

  # RoPE applied exactly once (hoisted out of the attention inner loop).
  xq_r, xk_r = rope_pallas(xq, xk, cos, sin, head_dim=head_dim,
                           scaling=float(head_dim) ** -0.5)

  attn = flash_attention_pallas(
      xq_r, xk_r, xv, mask,
      num_heads=num_heads, num_kv_heads=num_kv_heads, head_dim=head_dim)

  out = matmul_pallas(attn.reshape(B * S, q_size),
                      params["wo"].astype(compute_dtype),
                      out_dtype=hidden_states.dtype)
  return out.reshape(B, S, E)


# ------------------------------ reference ---------------------------------- #
def _rope_ref(x, cos, sin):
  # x: (B, S, H, D); cos/sin: (B, S, D/2)
  d2 = x.shape[-1] // 2
  x1, x2 = x[..., :d2], x[..., d2:]
  c = cos[:, :, None, :]
  s = sin[:, :, None, :]
  return jnp.concatenate([x1 * c - x2 * s, x1 * s + x2 * c], axis=-1)


def reference_forward(hidden_states, cos, sin, mask, params,
                      num_heads, num_kv_heads, head_dim):
  B, S, E = hidden_states.shape
  xq = (hidden_states @ params["wq"]).reshape(B, S, num_heads, head_dim)
  xk = (hidden_states @ params["wk"]).reshape(B, S, num_kv_heads, head_dim)
  xv = (hidden_states @ params["wv"]).reshape(B, S, num_kv_heads, head_dim)

  q = _rope_ref(xq, cos, sin).transpose(0, 2, 1, 3)
  k = _rope_ref(xk, cos, sin).transpose(0, 2, 1, 3)
  v = xv.transpose(0, 2, 1, 3)

  qpkv = num_heads // num_kv_heads
  k = jnp.repeat(k, qpkv, axis=1)
  v = jnp.repeat(v, qpkv, axis=1)

  scores = jnp.einsum("bhqd,bhkd->bhqk", q, k) * (head_dim ** -0.5) + mask
  p = jax.nn.softmax(scores, axis=-1)
  out = jnp.einsum("bhqk,bhkd->bhqd", p, v)
  out = out.transpose(0, 2, 1, 3).reshape(B, S, num_heads * head_dim)
  return out @ params["wo"]


# --------------------------------- main ------------------------------------ #
if __name__ == "__main__":
  B, S = 2, 8
  hidden_size = 32
  num_heads = 4
  num_kv_heads = 2
  head_dim = 16

  key = jax.random.PRNGKey(0)
  k_hs, k_wq, k_wk, k_wv, k_wo = jax.random.split(key, 5)

  hidden_states = jax.random.normal(k_hs, (B, S, hidden_size), jnp.float32)

  # Deterministic weights, stored as (in, out) = torch weight transposed.
  params = {
      "wq": 0.05 * jax.random.normal(
          k_wq, (hidden_size, num_heads * head_dim), jnp.float32),
      "wk": 0.05 * jax.random.normal(
          k_wk, (hidden_size, num_kv_heads * head_dim), jnp.float32),
      "wv": 0.05 * jax.random.normal(
          k_wv, (hidden_size, num_kv_heads * head_dim), jnp.float32),
      "wo": 0.05 * jax.random.normal(
          k_wo, (num_heads * head_dim, hidden_size), jnp.float32),
  }
  # Pre-fused QKV weight (done once at load time in deployment).
  params["wqkv"] = jnp.concatenate(
      [params["wq"], params["wk"], params["wv"]], axis=1)

  # Rotary frequencies (freqs_cis = cos + i*sin), shape (B, S, head_dim/2).
  d2 = head_dim // 2
  inv_freq = 1.0 / (10000.0 ** (jnp.arange(0, head_dim, 2, jnp.float32)
                                / head_dim))
  angles = jnp.arange(S, dtype=jnp.float32)[:, None] * inv_freq[None, :]
  cos = jnp.broadcast_to(jnp.cos(angles)[None], (B, S, d2)).astype(jnp.float32)
  sin = jnp.broadcast_to(jnp.sin(angles)[None], (B, S, d2)).astype(jnp.float32)

  # Causal additive mask, (B, 1, S, S).
  causal_bool = jnp.tril(jnp.ones((S, S), jnp.bool_))
  mask = jnp.where(causal_bool, 0.0, -1e30).astype(jnp.float32)
  mask = jnp.broadcast_to(mask[None, None], (B, 1, S, S))

  ref = reference_forward(hidden_states, cos, sin, mask, params,
                          num_heads, num_kv_heads, head_dim)
  ref = jax.block_until_ready(ref)

  # Path 1: causal mask generated in-kernel (iota), masked KV DMAs elided.
  out_causal = gemma_attention_forward(
      hidden_states, cos, sin, params,
      num_heads=num_heads, num_kv_heads=num_kv_heads, head_dim=head_dim,
      mask=None)
  out_causal = jax.block_until_ready(out_causal)

  # Path 2: explicit additive mask (exact module semantics).
  out_masked = gemma_attention_forward(
      hidden_states, cos, sin, params,
      num_heads=num_heads, num_kv_heads=num_kv_heads, head_dim=head_dim,
      mask=mask)
  out_masked = jax.block_until_ready(out_masked)

  assert out_causal.shape == (B, S, hidden_size)
  assert out_masked.shape == (B, S, hidden_size)
  # Tolerance covers the bf16 MXU inputs (f32 reference) and the
  # approx-reciprocal softmax normalization; real bugs (RoPE/mask/GQA) would
  # produce errors O(0.1) or larger at these magnitudes.
  err_c = float(jnp.max(jnp.abs(out_causal - ref)))
  err_m = float(jnp.max(jnp.abs(out_masked - ref)))
  assert jnp.allclose(out_causal, ref, atol=2e-2, rtol=2e-2), err_c
  assert jnp.allclose(out_masked, ref, atol=2e-2, rtol=2e-2), err_m

  print("KERNEL_OK")
</pallas_src>

<mosaic_0001>
module attributes {stable_mosaic.version = 11 : i64} {
  func.func @_matmul_kernel(%arg0: i32, %arg1: i32, %arg2: i32, %arg3: memref<16x32xbf16, #tpu.memory_space<vmem>>, %arg4: memref<32x128xbf16, #tpu.memory_space<vmem>>, %arg5: memref<16x128xbf16, #tpu.memory_space<vmem>>, %arg6: memref<16x128xf32, #tpu.memory_space<vmem>>) attributes {dimension_semantics = [#tpu.dimension_semantics<parallel>, #tpu.dimension_semantics<parallel>, #tpu.dimension_semantics<arbitrary>], iteration_bounds = array<i64: 1, 1, 1>, scalar_prefetch = 0 : i64, scratch_operands = 1 : i64, tpu.core_type = #tpu.core_type<tc>, window_params = [{transform_indices = @transform_0, window_bounds = array<i64: 16, 32>}, {transform_indices = @transform_1, window_bounds = array<i64: 32, 128>}, {transform_indices = @transform_2, window_bounds = array<i64: 16, 128>}]} {
    %c0_i32 = arith.constant 0 : i32
    %0 = arith.cmpi eq, %arg2, %c0_i32 : i32
    %1 = arith.extui %0 : i1 to i32
    %c0_i32_0 = arith.constant 0 : i32
    %2 = arith.cmpi ne, %1, %c0_i32_0 : i32
    scf.if %2 {
      %cst_10 = arith.constant 0.000000e+00 : f32
      %12 = vector.broadcast %cst_10 : f32 to vector<16x128xf32>
      %c0_11 = arith.constant 0 : index
      %c0_12 = arith.constant 0 : index
      %13 = vector.load %arg6[%c0_11, %c0_12] : memref<16x128xf32, #tpu.memory_space<vmem>>, vector<16x128xf32>
      tpu.vector_store %arg6[%c0_11, %c0_12], %12 {strides = array<i32>} : memref<16x128xf32, #tpu.memory_space<vmem>>, vector<16x128xf32>,
    } else {
    }
    %c0 = arith.constant 0 : index
    %c0_1 = arith.constant 0 : index
    %3 = vector.load %arg6[%c0, %c0_1] : memref<16x128xf32, #tpu.memory_space<vmem>>, vector<16x128xf32>
    %c0_2 = arith.constant 0 : index
    %c0_3 = arith.constant 0 : index
    %4 = vector.load %arg3[%c0_2, %c0_3] : memref<16x32xbf16, #tpu.memory_space<vmem>>, vector<16x32xbf16>
    %c0_4 = arith.constant 0 : index
    %c0_5 = arith.constant 0 : index
    %5 = vector.load %arg4[%c0_4, %c0_5] : memref<32x128xbf16, #tpu.memory_space<vmem>>, vector<32x128xbf16>
    %cst = arith.constant dense<0.000000e+00> : vector<16x128xf32>
    %6 = tpu.matmul %4, %5, %cst {dimension_numbers = #tpu.dot_dimension_numbers<[1], [0], [0], [1], [0, 0, 1, 1], [], []>} : vector<16x32xbf16>, vector<32x128xbf16>, vector<16x128xf32> -> vector<16x128xf32>
    %7 = arith.addf %3, %6 : vector<16x128xf32>
    %c0_6 = arith.constant 0 : index
    %c0_7 = arith.constant 0 : index
    %8 = vector.load %arg6[%c0_6, %c0_7] : memref<16x128xf32, #tpu.memory_space<vmem>>, vector<16x128xf32>
    tpu.vector_store %arg6[%c0_6, %c0_7], %7 {strides = array<i32>} : memref<16x128xf32, #tpu.memory_space<vmem>>, vector<16x128xf32>,
    %c0_i32_8 = arith.constant 0 : i32
    %9 = arith.cmpi eq, %arg2, %c0_i32_8 : i32
    %10 = arith.extui %9 : i1 to i32
    %c0_i32_9 = arith.constant 0 : i32
    %11 = arith.cmpi ne, %10, %c0_i32_9 : i32
    scf.if %11 {
      %c0_10 = arith.constant 0 : index
      %c0_11 = arith.constant 0 : index
      %12 = vector.load %arg6[%c0_10, %c0_11] : memref<16x128xf32, #tpu.memory_space<vmem>>, vector<16x128xf32>
      %13 = arith.truncf %12 : vector<16x128xf32> to vector<16x128xbf16>
      %c0_12 = arith.constant 0 : index
      %c0_13 = arith.constant 0 : index
      %14 = vector.load %arg5[%c0_12, %c0_13] : memref<16x128xbf16, #tpu.memory_space<vmem>>, vector<16x128xbf16>
      tpu.vector_store %arg5[%c0_12, %c0_13], %13 {strides = array<i32>} : memref<16x128xbf16, #tpu.memory_space<vmem>>, vector<16x128xbf16>,
    } else {
    }
    return
  }
  func.func @transform_0(%arg0: i32, %arg1: i32, %arg2: i32) -> (i32, i32) {
    %c0_i32 = arith.constant 0 : i32
    return %arg0, %arg2 : i32, i32
  }
  func.func @transform_1(%arg0: i32, %arg1: i32, %arg2: i32) -> (i32, i32) {
    %c0_i32 = arith.constant 0 : i32
    return %arg2, %arg1 : i32, i32
  }
  func.func @transform_2(%arg0: i32, %arg1: i32, %arg2: i32) -> (i32, i32) {
    %c0_i32 = arith.constant 0 : i32
    return %arg0, %arg1 : i32, i32
  }
}

</mosaic_0001>

<llo_original>
// kernel: tpu_custom_call.1
$region0: #{tpu_custom_call.1}
  #allocation0 [shape = 'u32[]', space=smem, size = 0x4, offset = 0x4, fixed_abs, tag = 'smem constant byte address 0x4 - core index']
  #allocation1 [shape = 'u32[144,128]{1,0:T(1,128)}', space=vmem, size = 0x12000, scoped, tag = 'internal scratch']
  #allocation2 [shape = 'f32[16,128]{1,0:T(8,128)}', space=vmem, size = 0x2000, scoped, tag = 'scratch operand']
  %s0 = inlined_call_operand.hbm [shape: bf16[16,32], index: 0, kind: input, shape index: {}]
  %s1 = inlined_call_operand.hbm [shape: bf16[32,128], index: 1, kind: input, shape index: {}]
  %s2 = inlined_call_operand.hbm [shape: bf16[16,128], index: 2, kind: output, shape index: {}]
  %s3 = sld [smem:[#allocation0]]
  $region34: #{tpu_custom_call.1} parent=0
    _
  %s5 = ssub.s32 1, %s3
  %s6 = scalar_select 0, %s5, %s3
  $region1: #{tpu_custom_call.1} parent=0
    #allocation3 [shape = 'u8[4096]{0}', space=vmem, size = 0x1000, scoped, tag = 'input window, operand 0, single buffered']
    #allocation4 [shape = 's32[1]{0}', space=sflag, size = 0x4, scoped, tag = 'scoped memory for tpu_custom_call.1']
    #allocation5 [shape = 's32[1]{0}', space=sflag, size = 0x4, scoped, tag = 'scoped memory for tpu_custom_call.1']
    #allocation6 [shape = 'u8[8192]{0}', space=vmem, size = 0x2000, scoped, tag = 'input window, operand 1, single buffered']
    #allocation7 [shape = 's32[1]{0}', space=sflag, size = 0x4, scoped, tag = 'scoped memory for tpu_custom_call.1']
    #allocation8 [shape = 'u8[4096]{0}', space=vmem, size = 0x1000, scoped, tag = 'output window, operand 0, single buffered']
    %7 = vsyncpa [#allocation4], 0
    %8 = vsyncpa [#allocation7], 0
    %9 = vsyncpa [#allocation5], 0
    // Predicated region
    $region2: #{tpu_custom_call.1} parent=1 // pred_check
      _
    $region3: #{tpu_custom_call.1} parent=1 // pred_check_branch
      %11 = sbr.rel (0) target = $region5
    $region4: #{tpu_custom_call.1} parent=1 // pred_region
      %s13 = ssub.s32 128, 128
      %14 = vsyncadd [#allocation4], %s13
      %s15 = sshll.u32 [#allocation3], 4
      %s16 = int_to_ptr.vmem [resolvable:$true] %s15
      %21 = dma.hbm_to_vmem [thread:$0]  %s0, 128, %s16, [#allocation4], 64, 64, 4
    $region5: #{tpu_custom_call.1} parent=1 // pred_fallthru
      _
    // Predicated region
    $region6: #{tpu_custom_call.1} parent=1 // pred_check
      _
    $region7: #{tpu_custom_call.1} parent=1 // pred_check_branch
      %23 = sbr.rel (0) target = $region9
    $region8: #{tpu_custom_call.1} parent=1 // pred_region
      %s25 = ssub.s32 256, 256
      %26 = vsyncadd [#allocation7], %s25
      %s27 = sshll.u32 [#allocation6], 4
      %s28 = int_to_ptr.vmem [resolvable:$true] %s27
      %33 = dma.hbm_to_vmem [thread:$0]  %s1, 256, %s28, [#allocation7], 64, 64, 4
    $region9: #{tpu_custom_call.1} parent=1 // pred_fallthru
      _
    // Predicated region
    $region10: #{tpu_custom_call.1} parent=1 // pred_check
      _
    $region11: #{tpu_custom_call.1} parent=1 // pred_check_branch
      %35 = sbr.rel (0) target = $region13
    $region12: #{tpu_custom_call.1} parent=1 // pred_region
      %36 = dma.done [#allocation4], 128
    $region13: #{tpu_custom_call.1} parent=1 // pred_fallthru
      _
    // Predicated region
    $region14: #{tpu_custom_call.1} parent=1 // pred_check
      _
    $region15: #{tpu_custom_call.1} parent=1 // pred_check_branch
      %38 = sbr.rel (0) target = $region17
    $region16: #{tpu_custom_call.1} parent=1 // pred_region
      %39 = dma.done [#allocation7], 256
    $region17: #{tpu_custom_call.1} parent=1 // pred_fallthru
      _
    %p41 = scmp.eq.s32.totalorder 0, 0
    // Predicated region
    $region18: #{tpu_custom_call.1} parent=1 // pred_check
      %p42 = pneg %p41
    $region19: #{tpu_custom_call.1} parent=1 // pred_check_branch
      %44 = sbr.rel (%p42) target = $region21
    $region20: #{tpu_custom_call.1} parent=1 // pred_region
      %45 = vst [vmem:[#allocation2] sm:$0xff] 0.0
      %46 = vst [vmem:[#allocation2 + $0x8] sm:$0xff] 0.0
    $region21: #{tpu_custom_call.1} parent=1 // pred_fallthru
      _
    %v47 = vld [vmem:[#allocation2] sm:$0xff]
    %v48 = vld [vmem:[#allocation2 + $0x8] sm:$0xff]
    %v49 = vld [vmem:[#allocation3] sm:$0xf]
    %v50 = vld [vmem:[#allocation3 + $0x4] sm:$0xf]
    %v51 = vld [vmem:[#allocation6] sm:$0xf]
    %v52 = vld [vmem:[#allocation6 + $0x4] sm:$0xf]
    %v53 = vld [vmem:[#allocation6 + $0x8] sm:$0xf]
    %v54 = vld [vmem:[#allocation6 + $0xc] sm:$0xf]
    %v57 = vunpack.c.l.b16 %v49
    %v58 = vunpack.c.l.b16 %v50
    %v59 = vpack.c.b16 %v58, %v57
    %v64 = vunpack.c.l.b16 %v51
    %v65 = vunpack.c.l.b16 %v52
    %v66 = vunpack.c.l.b16 %v53
    %v67 = vunpack.c.l.b16 %v54
    %v68 = vpack.c.b16 %v65, %v64
    %v69 = vpack.c.b16 %v67, %v66
    %vm72 = vcmask 261120
    %v74 = vsel %vm72, %v59, 0
    %76 = vmatprep.subr.bf16.mxu0 0
    %77 = vmatpush1.bf16.msra.mxu0 %v68
    %78 = vmatprep.subr.bf16.mxu0 0
    %79 = vmatpush1.bf16.msra.mxu0 %v69
    %80 = vmatprep.subr.bf16.mxu0 0
    %81 = vmatpush1.bf16.msra.mxu0 0
    %82 = vmatprep.subr.bf16.mxu0 0
    %83 = vmatpush1.bf16.msra.mxu0 0
    %84 = vmatprep.subr.bf16.mxu0 0
    %85 = vmatpush1.bf16.msra.mxu0 0
    %86 = vmatprep.subr.bf16.mxu0 0
    %87 = vmatpush1.bf16.msra.mxu0 0
    %88 = vmatprep.subr.bf16.mxu0 0
    %89 = vmatpush1.bf16.msra.mxu0 0
    %90 = vmatprep.subr.bf16.mxu0 0
    %91 = vmatpush1.bf16.msra.mxu0 0
    %92 = vmatprep.subr.bf16.mxu0 0
    %93 = vmatpush1.bf16.msra.mxu0 0
    %94 = vmatprep.subr.bf16.mxu0 0
    %95 = vmatpush1.bf16.msra.mxu0 0
    %96 = vmatprep.subr.bf16.mxu0 0
    %97 = vmatpush1.bf16.msra.mxu0 0
    %98 = vmatprep.subr.bf16.mxu0 0
    %99 = vmatpush1.bf16.msra.mxu0 0
    %100 = vmatprep.subr.bf16.mxu0 0
    %101 = vmatpush1.bf16.msra.mxu0 0
    %102 = vmatprep.subr.bf16.mxu0 0
    %103 = vmatpush1.bf16.msra.mxu0 0
    %104 = vmatprep.subr.bf16.mxu0 0
    %105 = vmatpush1.bf16.msra.mxu0 0
    %106 = vmatprep.subr.bf16.mxu0 0
    %107 = vmatpush1.bf16.msra.mxu0 0
    %108 = vmatprep.mubr.bf16.mxu0 0
    %109 = vmatmul.mubr.bf16.gmra.mrb[0].mxu0 %v74
    %v110 = vpop.f32.mrb[0].mxu0
    %v111 = vadd.f32 0.0, %v110
    %v112 = vpop.f32.mrb[0].mxu0
    %v113 = vpop.f32.mrb[0].mxu0
    %v114 = vadd.f32 0.0, %v113
    %v115 = vpop.f32.mrb[0].mxu0
    %116 = vdwg.mxu0
    %v117 = vadd.f32 %v47, %v111
    %v118 = vadd.f32 %v48, %v114
    %119 = vst [vmem:[#allocation2] sm:$0xff] %v117
    %120 = vst [vmem:[#allocation2 + $0x8] sm:$0xff] %v118
    // Predicated region
    $region22: #{tpu_custom_call.1} parent=1 // pred_check
      %p121 = pneg %p41
    $region23: #{tpu_custom_call.1} parent=1 // pred_check_branch
      %123 = sbr.rel (%p121) target = $region25
    $region24: #{tpu_custom_call.1} parent=1 // pred_region
      %v124 = vld [vmem:[#allocation2] sm:$0xff]
      %v125 = vld [vmem:[#allocation2 + $0x8] sm:$0xff]
      %v126 = vpack.c.bf16 %v125, %v124
      %v128 = vunpack.c.l.b16 %v126
      %v129 = vunpack.c.h.b16 %v126
      %v130 = vpack.c.b16 %v128, %v128
      %v131 = vpack.c.b16 %v129, %v129
      %134 = vst [vmem:[#allocation8] sm:$0xf] %v130
      %135 = vst [vmem:[#allocation8 + $0x4] sm:$0xf] %v131
    $region25: #{tpu_custom_call.1} parent=1 // pred_fallthru
      _
    // Predicated region
    $region26: #{tpu_custom_call.1} parent=1 // pred_check
      _
    $region27: #{tpu_custom_call.1} parent=1 // pred_check_branch
      %137 = sbr.rel (0) target = $region29
    $region28: #{tpu_custom_call.1} parent=1 // pred_region
      %s139 = ssub.s32 128, 128
      %140 = vsyncadd [#allocation5], %s139
      %s141 = sshll.u32 [#allocation8], 4
      %s142 = int_to_ptr.vmem [resolvable:$true] %s141
      %147 = dma.vmem_to_hbm [thread:$0]  %s142, 128, %s2, [#allocation5], 64, 64, 4
    $region29: #{tpu_custom_call.1} parent=1 // pred_fallthru
      _
    // Predicated region
    $region30: #{tpu_custom_call.1} parent=1 // pred_check
      _
    $region31: #{tpu_custom_call.1} parent=1 // pred_check_branch
      %149 = sbr.rel (0) target = $region33
    $region32: #{tpu_custom_call.1} parent=1 // pred_region
      %150 = dma.done [#allocation5], 128
    $region33: #{tpu_custom_call.1} parent=1 // pred_fallthru
      _
    %151 = vsyncpa [#allocation4], 1
    %152 = vsyncpa [#allocation7], 1
    %153 = vsyncpa [#allocation5], 1

</llo_original>
